<compile_context>
chip_gen: v6e
topology: v6e:2x2x1
jax: 0.10.0
libtpu: 0.0.40
codegen_flags: <defaults>
</compile_context>

<pallas_src>
import functools
import math

import jax
import jax.numpy as jnp
from jax.experimental import pallas as pl
from jax.experimental.pallas import tpu as pltpu

_EPS = 1e-5
_LANES = 128


def _lane_group(c):
    """Pixels folded into the lane axis so lane_w = G*C is lane-dense."""
    if c % _LANES == 0:
        return 1
    if _LANES % c == 0:
        return _LANES // c
    # lane_w = lcm(C, 128); G is always a power of two (128 / gcd(C, 128)).
    return _LANES // math.gcd(c, _LANES)


# ----------------------------------------------------------------------------
# Fused fast path (small tensors): stats + normalize in one kernel.
# ----------------------------------------------------------------------------
def _bn_fused_kernel(x_ref, gamma_ref, beta_ref, o_ref, *, inv_n, group):
    x = x_ref[...].astype(jnp.float32)
    lane_sum = jnp.sum(x, axis=0, keepdims=True)          # (1, lane_w)
    lane_sumsq = jnp.sum(x * x, axis=0, keepdims=True)    # (1, lane_w)

    # Fold the `group` lane-replicas of each channel with log2(group) XLU
    # rolls (group is always a power of two).  Afterwards every lane holds
    # the full per-channel sums for its channel.
    lane_w = x.shape[-1]
    shift = lane_w // group                                # == C
    while shift < lane_w:
        lane_sum = lane_sum + pltpu.roll(lane_sum, shift, axis=1)
        lane_sumsq = lane_sumsq + pltpu.roll(lane_sumsq, shift, axis=1)
        shift *= 2

    mean = lane_sum * inv_n
    # NOTE: E[x^2]-E[x]^2 in f32 can cancel for strongly off-center data.
    var = jnp.maximum(lane_sumsq * inv_n - mean * mean, 0.0)   # biased var
    inv_std = jax.lax.rsqrt(var + _EPS)
    scale = gamma_ref[...] * inv_std
    bias = beta_ref[...] - mean * scale
    o_ref[...] = (x * scale + bias).astype(o_ref.dtype)


# ----------------------------------------------------------------------------
# Tiled path, pass 1: per-lane sum / sum-of-squares partial accumulators.
# ----------------------------------------------------------------------------
def _bn_stats_kernel(x_ref, sum_ref, sumsq_ref, *, tile_rows, valid_rows):
    j = pl.program_id(1)                     # reduction axis ("arbitrary")

    @pl.when(j == 0)
    def _():
        sum_ref[...] = jnp.zeros_like(sum_ref)
        sumsq_ref[...] = jnp.zeros_like(sumsq_ref)

    # Global tile id / row base for this grid step.  Tail (and any clamped
    # duplicate) tiles mask their invalid rows to zero: OOB reads of a
    # partial block have unspecified values, so the mask is required.
    t = pl.program_id(0) * pl.num_programs(1) + j
    base = t * tile_rows
    lane_w = x_ref.shape[-1]
    row_ids = base + jax.lax.broadcasted_iota(jnp.int32, (tile_rows, lane_w), 0)
    x = x_ref[...].astype(jnp.float32)
    x = jnp.where(row_ids < valid_rows, x, 0.0)

    # Sublane-preserving partial reduce: (tile, L) -> (tile//8, 8, L) -> sum
    # over axis 0 is a pure vreg-wise VPU add tree (no per-tile XLU reduce);
    # the 8 sublanes are folded once in the JAX epilogue.
    xs = x.reshape(tile_rows // 8, 8, lane_w)
    sum_ref[...] += jnp.sum(xs, axis=0)[None]
    sumsq_ref[...] += jnp.sum(xs * xs, axis=0)[None]


# ----------------------------------------------------------------------------
# Tiled path, pass 2: y = x * scale + bias (one FMA per element).
# ----------------------------------------------------------------------------
def _bn_norm_kernel(x_ref, scale_ref, bias_ref, o_ref):
    x = x_ref[...].astype(jnp.float32)
    o_ref[...] = (x * scale_ref[...] + bias_ref[...]).astype(o_ref.dtype)


def prenorm(x_nhwc, gamma, beta, *, block_rows=4096, max_fused_bytes=2 << 20):
    """PreNorm forward (BatchNorm2d over the channel dim, fn = identity).

    x_nhwc: (B, H, W, C);  gamma, beta: (C,)
    """
    B, H, W, C = x_nhwc.shape
    N = B * H * W

    G = _lane_group(C)
    lane_w = G * C

    # Pad only to a multiple of G (<= G-1 zero pixels; exact for the stats).
    n_pad = pl.cdiv(N, G) * G
    rows = n_pad // G

    x2d = x_nhwc.reshape(N, C)
    if n_pad != N:
        x2d = jnp.pad(x2d, ((0, n_pad - N), (0, 0)))
    x_packed = x2d.reshape(rows, lane_w)

    gamma_f = gamma.astype(jnp.float32)
    beta_f = beta.astype(jnp.float32)

    fused = rows * lane_w * x_nhwc.dtype.itemsize <= max_fused_bytes
    if fused:
        # Single kernel: 1 HBM read + 1 write, no inter-kernel epilogue.
        gamma_l = jnp.tile(gamma_f, G).reshape(1, lane_w)
        beta_l = jnp.tile(beta_f, G).reshape(1, lane_w)
        out_packed = pl.pallas_call(
            functools.partial(_bn_fused_kernel, inv_n=1.0 / N, group=G),
            out_shape=jax.ShapeDtypeStruct((rows, lane_w), x_nhwc.dtype),
            grid=(1,),
            in_specs=[
                pl.BlockSpec((rows, lane_w), lambda i: (0, 0)),
                pl.BlockSpec((1, lane_w), lambda i: (0, 0)),
                pl.BlockSpec((1, lane_w), lambda i: (0, 0)),
            ],
            out_specs=pl.BlockSpec((rows, lane_w), lambda i: (0, 0)),
        )(x_packed, gamma_l, beta_l)
    else:
        # ---- tile selection: big tiles, multiple of 8 rows, VMEM-safe ----
        block_rows = max(8, (int(block_rows) // 8) * 8)
        max_tile = max(8, (((2 * 1024 * 1024) // (lane_w * 4)) // 8) * 8)
        tile = min(block_rows, max_tile, pl.cdiv(rows, 8) * 8)
        n_tiles = pl.cdiv(rows, tile)

        # v7x megacore: shard the stats reduction across 2 TensorCores with
        # per-core partial accumulators; harmless on single-TC v5e/v6e.
        n_split = 2 if n_tiles >= 2 else 1
        n_j = pl.cdiv(n_tiles, n_split)

        def x_map(p, j):
            # Clamp the (possibly) duplicated trailing grid step to a valid
            # block; its rows are masked to zero in-kernel.
            return (jnp.minimum(p * n_j + j, n_tiles - 1), 0)

        lane_sum, lane_sumsq = pl.pallas_call(
            functools.partial(_bn_stats_kernel, tile_rows=tile, valid_rows=rows),
            out_shape=(
                jax.ShapeDtypeStruct((n_split, 8, lane_w), jnp.float32),
                jax.ShapeDtypeStruct((n_split, 8, lane_w), jnp.float32),
            ),
            grid=(n_split, n_j),
            in_specs=[pl.BlockSpec((tile, lane_w), x_map)],
            out_specs=(
                pl.BlockSpec((1, 8, lane_w), lambda p, j: (p, 0, 0)),
                pl.BlockSpec((1, 8, lane_w), lambda p, j: (p, 0, 0)),
            ),
            compiler_params=pltpu.CompilerParams(
                dimension_semantics=("parallel", "arbitrary")),
        )(x_packed)

        # ---- tiny epilogue: fold cores/sublanes/lane-groups, fuse affine ----
        ch_sum = lane_sum.sum(axis=(0, 1)).reshape(G, C).sum(axis=0)     # (C,)
        ch_sumsq = lane_sumsq.sum(axis=(0, 1)).reshape(G, C).sum(axis=0)  # (C,)
        inv_n = 1.0 / N
        mean = ch_sum * inv_n
        # NOTE: E[x^2]-E[x]^2 in f32 can cancel for strongly off-center data.
        var = jnp.maximum(ch_sumsq * inv_n - mean * mean, 0.0)  # biased var
        inv_std = jax.lax.rsqrt(var + _EPS)
        scale = gamma_f * inv_std
        bias = beta_f - mean * scale
        scale_l = jnp.tile(scale, G).reshape(1, lane_w)
        bias_l = jnp.tile(bias, G).reshape(1, lane_w)

        # ---- pass 2: normalize; no mask needed (OOB output writes masked,
        #      garbage tail rows are discarded below) ----
        out_packed = pl.pallas_call(
            _bn_norm_kernel,
            out_shape=jax.ShapeDtypeStruct((rows, lane_w), x_nhwc.dtype),
            grid=(n_tiles,),
            in_specs=[
                pl.BlockSpec((tile, lane_w), lambda i: (i, 0)),
                pl.BlockSpec((1, lane_w), lambda i: (0, 0)),
                pl.BlockSpec((1, lane_w), lambda i: (0, 0)),
            ],
            out_specs=pl.BlockSpec((tile, lane_w), lambda i: (i, 0)),
            compiler_params=pltpu.CompilerParams(
                dimension_semantics=("parallel",)),
        )(x_packed, scale_l, bias_l)

    out2d = out_packed.reshape(n_pad, C)
    if n_pad != N:
        out2d = out2d[:N]
    return out2d.reshape(B, H, W, C)


def _prenorm_ref(x_nhwc, gamma, beta, eps=_EPS):
    # Pure-JAX reference (matches torch BatchNorm2d training-mode forward).
    mean = jnp.mean(x_nhwc, axis=(0, 1, 2), keepdims=True)
    var = jnp.mean((x_nhwc - mean) ** 2, axis=(0, 1, 2), keepdims=True)
    return (x_nhwc - mean) / jnp.sqrt(var + eps) * gamma + beta


if __name__ == "__main__":
    key = jax.random.PRNGKey(0)
    kx, kg, kb, kx2, kx3 = jax.random.split(key, 5)

    # Case 1: fused single-kernel fast path (small tensor), dim = C = 4.
    B, H, W, C = 2, 16, 16, 4
    x = jax.random.normal(kx, (B, H, W, C), dtype=jnp.float32)
    gamma = 1.0 + 0.1 * jax.random.normal(kg, (C,), dtype=jnp.float32)
    beta = 0.1 * jax.random.normal(kb, (C,), dtype=jnp.float32)
    out = jax.block_until_ready(prenorm(x, gamma, beta))
    ref = _prenorm_ref(x, gamma, beta)
    assert out.shape == (B, H, W, C)
    assert jnp.allclose(out, ref, atol=1e-4, rtol=1e-4), "fused path mismatch"

    # Case 2: tiled two-pass path with N % G != 0 (pad to G + tail masking)
    # and the 2-way-parallel stats grid (forced via tiny block_rows).
    x2 = jax.random.normal(kx2, (2, 13, 13, C), dtype=jnp.float32)
    out2 = jax.block_until_ready(
        prenorm(x2, gamma, beta, block_rows=8, max_fused_bytes=0))
    ref2 = _prenorm_ref(x2, gamma, beta)
    assert jnp.allclose(out2, ref2, atol=1e-4, rtol=1e-4), "tiled path mismatch"

    # Case 3: channel count that does not divide 128 (lcm lane packing).
    C3 = 3
    x3 = jax.random.normal(kx3, (1, 32, 32, C3), dtype=jnp.float32)
    g3 = 1.0 + 0.05 * jnp.arange(C3, dtype=jnp.float32)
    b3 = 0.1 * jnp.arange(C3, dtype=jnp.float32)
    out3 = jax.block_until_ready(prenorm(x3, g3, b3, max_fused_bytes=0))
    ref3 = _prenorm_ref(x3, g3, b3)
    assert jnp.allclose(out3, ref3, atol=1e-4, rtol=1e-4), "C=3 path mismatch"

    print("KERNEL_OK")
</pallas_src>

<mosaic_0001>
module attributes {stable_mosaic.version = 11 : i64} {
  func.func @_bn_fused_kernel(%arg0: i32, %arg1: memref<16x128xf32, #tpu.memory_space<vmem>>, %arg2: memref<1x128xf32, #tpu.memory_space<vmem>>, %arg3: memref<1x128xf32, #tpu.memory_space<vmem>>, %arg4: memref<16x128xf32, #tpu.memory_space<vmem>>) attributes {dimension_semantics = [#tpu.dimension_semantics<arbitrary>], iteration_bounds = array<i64: 1>, scalar_prefetch = 0 : i64, scratch_operands = 0 : i64, tpu.core_type = #tpu.core_type<tc>, window_params = [{pipeline_mode = #tpu.pipeline_mode<synchronous>, transform_indices = @transform_0, window_bounds = array<i64: 16, 128>}, {pipeline_mode = #tpu.pipeline_mode<synchronous>, transform_indices = @transform_1, window_bounds = array<i64: 1, 128>}, {pipeline_mode = #tpu.pipeline_mode<synchronous>, transform_indices = @transform_2, window_bounds = array<i64: 1, 128>}, {pipeline_mode = #tpu.pipeline_mode<synchronous>, transform_indices = @transform_3, window_bounds = array<i64: 16, 128>}]} {
    %c0 = arith.constant 0 : index
    %c0_0 = arith.constant 0 : index
    %0 = vector.load %arg1[%c0, %c0_0] : memref<16x128xf32, #tpu.memory_space<vmem>>, vector<16x128xf32>
    %cst = arith.constant dense<0.000000e+00> : vector<128xf32>
    %1 = vector.multi_reduction <add>, %0, %cst [0] : vector<16x128xf32> to vector<128xf32>
    %2 = vector.shape_cast %1 : vector<128xf32> to vector<1x128xf32>
    %3 = arith.mulf %0, %0 : vector<16x128xf32>
    %cst_1 = arith.constant dense<0.000000e+00> : vector<128xf32>
    %4 = vector.multi_reduction <add>, %3, %cst_1 [0] : vector<16x128xf32> to vector<128xf32>
    %5 = vector.shape_cast %4 : vector<128xf32> to vector<1x128xf32>
    %c4_i32 = arith.constant 4 : i32
    %6 = tpu.dynamic_rotate %2 by %c4_i32 dim 1 : vector<1x128xf32>, i32 -> vector<1x128xf32>
    %7 = arith.addf %2, %6 : vector<1x128xf32>
    %c4_i32_2 = arith.constant 4 : i32
    %8 = tpu.dynamic_rotate %5 by %c4_i32_2 dim 1 : vector<1x128xf32>, i32 -> vector<1x128xf32>
    %9 = arith.addf %5, %8 : vector<1x128xf32>
    %c8_i32 = arith.constant 8 : i32
    %10 = tpu.dynamic_rotate %7 by %c8_i32 dim 1 : vector<1x128xf32>, i32 -> vector<1x128xf32>
    %11 = arith.addf %7, %10 : vector<1x128xf32>
    %c8_i32_3 = arith.constant 8 : i32
    %12 = tpu.dynamic_rotate %9 by %c8_i32_3 dim 1 : vector<1x128xf32>, i32 -> vector<1x128xf32>
    %13 = arith.addf %9, %12 : vector<1x128xf32>
    %c16_i32 = arith.constant 16 : i32
    %14 = tpu.dynamic_rotate %11 by %c16_i32 dim 1 : vector<1x128xf32>, i32 -> vector<1x128xf32>
    %15 = arith.addf %11, %14 : vector<1x128xf32>
    %c16_i32_4 = arith.constant 16 : i32
    %16 = tpu.dynamic_rotate %13 by %c16_i32_4 dim 1 : vector<1x128xf32>, i32 -> vector<1x128xf32>
    %17 = arith.addf %13, %16 : vector<1x128xf32>
    %c32_i32 = arith.constant 32 : i32
    %18 = tpu.dynamic_rotate %15 by %c32_i32 dim 1 : vector<1x128xf32>, i32 -> vector<1x128xf32>
    %19 = arith.addf %15, %18 : vector<1x128xf32>
    %c32_i32_5 = arith.constant 32 : i32
    %20 = tpu.dynamic_rotate %17 by %c32_i32_5 dim 1 : vector<1x128xf32>, i32 -> vector<1x128xf32>
    %21 = arith.addf %17, %20 : vector<1x128xf32>
    %c64_i32 = arith.constant 64 : i32
    %22 = tpu.dynamic_rotate %19 by %c64_i32 dim 1 : vector<1x128xf32>, i32 -> vector<1x128xf32>
    %23 = arith.addf %19, %22 : vector<1x128xf32>
    %c64_i32_6 = arith.constant 64 : i32
    %24 = tpu.dynamic_rotate %21 by %c64_i32_6 dim 1 : vector<1x128xf32>, i32 -> vector<1x128xf32>
    %25 = arith.addf %21, %24 : vector<1x128xf32>
    %cst_7 = arith.constant 0.001953125 : f32
    %26 = vector.broadcast %cst_7 : f32 to vector<1x128xf32>
    %27 = arith.mulf %23, %26 : vector<1x128xf32>
    %cst_8 = arith.constant 0.001953125 : f32
    %28 = vector.broadcast %cst_8 : f32 to vector<1x128xf32>
    %29 = arith.mulf %25, %28 : vector<1x128xf32>
    %30 = arith.mulf %27, %27 : vector<1x128xf32>
    %31 = arith.subf %29, %30 : vector<1x128xf32>
    %cst_9 = arith.constant 0.000000e+00 : f32
    %32 = vector.broadcast %cst_9 : f32 to vector<1x128xf32>
    %33 = arith.maximumf %31, %32 : vector<1x128xf32>
    %cst_10 = arith.constant 9.99999974E-6 : f32
    %34 = vector.broadcast %cst_10 : f32 to vector<1x128xf32>
    %35 = arith.addf %33, %34 : vector<1x128xf32>
    %36 = math.rsqrt %35 : vector<1x128xf32>
    %c0_11 = arith.constant 0 : index
    %c0_12 = arith.constant 0 : index
    %37 = vector.load %arg2[%c0_11, %c0_12] : memref<1x128xf32, #tpu.memory_space<vmem>>, vector<1x128xf32>
    %38 = arith.mulf %37, %36 : vector<1x128xf32>
    %c0_13 = arith.constant 0 : index
    %c0_14 = arith.constant 0 : index
    %39 = vector.load %arg3[%c0_13, %c0_14] : memref<1x128xf32, #tpu.memory_space<vmem>>, vector<1x128xf32>
    %40 = arith.mulf %27, %38 : vector<1x128xf32>
    %41 = arith.subf %39, %40 : vector<1x128xf32>
    %42 = vector.broadcast %38 : vector<1x128xf32> to vector<16x128xf32>
    %43 = arith.mulf %0, %42 : vector<16x128xf32>
    %44 = vector.broadcast %41 : vector<1x128xf32> to vector<16x128xf32>
    %45 = arith.addf %43, %44 : vector<16x128xf32>
    %c0_15 = arith.constant 0 : index
    %c0_16 = arith.constant 0 : index
    %46 = vector.load %arg4[%c0_15, %c0_16] : memref<16x128xf32, #tpu.memory_space<vmem>>, vector<16x128xf32>
    tpu.vector_store %arg4[%c0_15, %c0_16], %45 {strides = array<i32>} : memref<16x128xf32, #tpu.memory_space<vmem>>, vector<16x128xf32>,
    return
  }
  func.func @transform_0(%arg0: i32) -> (i32, i32) {
    %c0_i32 = arith.constant 0 : i32
    %c0_i32_0 = arith.constant 0 : i32
    %c0_i32_1 = arith.constant 0 : i32
    return %c0_i32, %c0_i32_0 : i32, i32
  }
  func.func @transform_1(%arg0: i32) -> (i32, i32) {
    %c0_i32 = arith.constant 0 : i32
    %c0_i32_0 = arith.constant 0 : i32
    %c0_i32_1 = arith.constant 0 : i32
    return %c0_i32, %c0_i32_0 : i32, i32
  }
  func.func @transform_2(%arg0: i32) -> (i32, i32) {
    %c0_i32 = arith.constant 0 : i32
    %c0_i32_0 = arith.constant 0 : i32
    %c0_i32_1 = arith.constant 0 : i32
    return %c0_i32, %c0_i32_0 : i32, i32
  }
  func.func @transform_3(%arg0: i32) -> (i32, i32) {
    %c0_i32 = arith.constant 0 : i32
    %c0_i32_0 = arith.constant 0 : i32
    %c0_i32_1 = arith.constant 0 : i32
    return %c0_i32, %c0_i32_0 : i32, i32
  }
}

</mosaic_0001>

<llo_original>
// kernel: tpu_custom_call.1
$region0: #{tpu_custom_call.1}
  #allocation0 [shape = 'u32[]', space=smem, size = 0x4, offset = 0x4, fixed_abs, tag = 'smem constant byte address 0x4 - core index']
  #allocation1 [shape = 'u32[144,128]{1,0:T(1,128)}', space=vmem, size = 0x12000, scoped, tag = 'internal scratch']
  %s0 = inlined_call_operand.hbm [shape: f32[16,128], index: 0, kind: input, shape index: {}]
  %s1 = inlined_call_operand.vmem [shape: f32[1,128], index: 1, kind: input, shape index: {}]
  %s2 = inlined_call_operand.vmem [shape: f32[1,128], index: 2, kind: input, shape index: {}]
  %s3 = inlined_call_operand.hbm [shape: f32[16,128], index: 3, kind: output, shape index: {}]
  %s4 = sld [smem:[#allocation0]]
  $region26: #{tpu_custom_call.1} parent=0
    _
  %s6 = ssub.s32 1, %s4
  %s7 = scalar_select 0, %s6, %s4
  $region1: #{tpu_custom_call.1} parent=0
    #allocation2 [shape = 'u8[8192]{0}', space=vmem, size = 0x2000, scoped, tag = 'input window, operand 0, single buffered']
    #allocation3 [shape = 's32[1]{0}', space=sflag, size = 0x4, scoped, tag = 'scoped memory for tpu_custom_call.1']
    #allocation4 [shape = 's32[1]{0}', space=sflag, size = 0x4, scoped, tag = 'scoped memory for tpu_custom_call.1']
    #allocation5 [shape = 'u8[8192]{0}', space=vmem, size = 0x2000, scoped, tag = 'output window, operand 0, single buffered']
    %8 = vsyncpa [#allocation3], 0
    %9 = vsyncpa [#allocation4], 0
    // Predicated region
    $region2: #{tpu_custom_call.1} parent=1 // pred_check
      _
    $region3: #{tpu_custom_call.1} parent=1 // pred_check_branch
      %11 = sbr.rel (0) target = $region5
    $region4: #{tpu_custom_call.1} parent=1 // pred_region
      %s13 = ssub.s32 256, 256
      %14 = vsyncadd [#allocation3], %s13
      %s15 = sshll.u32 [#allocation2], 4
      %s16 = int_to_ptr.vmem [resolvable:$true] %s15
      %21 = dma.hbm_to_vmem [thread:$0]  %s0, 256, %s16, [#allocation3], 128, 128, 8
    $region5: #{tpu_custom_call.1} parent=1 // pred_fallthru
      _
    // Predicated region
    $region6: #{tpu_custom_call.1} parent=1 // pred_check
      _
    $region7: #{tpu_custom_call.1} parent=1 // pred_check_branch
      %23 = sbr.rel (0) target = $region9
    $region8: #{tpu_custom_call.1} parent=1 // pred_region
      _
    $region9: #{tpu_custom_call.1} parent=1 // pred_fallthru
      _
    // Predicated region
    $region10: #{tpu_custom_call.1} parent=1 // pred_check
      _
    $region11: #{tpu_custom_call.1} parent=1 // pred_check_branch
      %25 = sbr.rel (0) target = $region13
    $region12: #{tpu_custom_call.1} parent=1 // pred_region
      _
    $region13: #{tpu_custom_call.1} parent=1 // pred_fallthru
      _
    // Predicated region
    $region14: #{tpu_custom_call.1} parent=1 // pred_check
      _
    $region15: #{tpu_custom_call.1} parent=1 // pred_check_branch
      %27 = sbr.rel (0) target = $region17
    $region16: #{tpu_custom_call.1} parent=1 // pred_region
      %28 = dma.done [#allocation3], 256
    $region17: #{tpu_custom_call.1} parent=1 // pred_fallthru
      _
    %v29 = vld [vmem:[#allocation2] sm:$0xff]
    %v30 = vld [vmem:[#allocation2 + $0x8] sm:$0xff]
    %v31 = vadd.f32 %v29, %v30
    %v32 = vrot.slane %v31, 4
    %v33 = vadd.f32 %v31, %v32
    %v34 = vrot.slane %v33, 2
    %v35 = vadd.f32 %v33, %v34
    %v36 = vrot.slane %v35, 1
    %v37 = vadd.f32 %v35, %v36
    %v38 = vmul.f32 %v29, %v29
    %v39 = vmul.f32 %v30, %v30
    %v40 = vadd.f32 %v38, %v39
    %v41 = vrot.slane %v40, 4
    %v42 = vadd.f32 %v40, %v41
    %v43 = vrot.slane %v42, 2
    %v44 = vadd.f32 %v42, %v43
    %v45 = vrot.slane %v44, 1
    %v46 = vadd.f32 %v44, %v45
    %47 = vrot.lane.b32.xlu0 %v37, 4
    %v48 = vpop.permute.xlu0 %47
    %v49 = vadd.f32 %v37, %v48
    %50 = vrot.lane.b32.xlu0 %v46, 4
    %v51 = vpop.permute.xlu0 %50
    %v52 = vadd.f32 %v46, %v51
    %53 = vrot.lane.b32.xlu0 %v49, 8
    %v54 = vpop.permute.xlu0 %53
    %v55 = vadd.f32 %v49, %v54
    %56 = vrot.lane.b32.xlu0 %v52, 8
    %v57 = vpop.permute.xlu0 %56
    %v58 = vadd.f32 %v52, %v57
    %59 = vrot.lane.b32.xlu0 %v55, 16
    %v60 = vpop.permute.xlu0 %59
    %v61 = vadd.f32 %v55, %v60
    %62 = vrot.lane.b32.xlu0 %v58, 16
    %v63 = vpop.permute.xlu0 %62
    %v64 = vadd.f32 %v58, %v63
    %65 = vrot.lane.b32.xlu0 %v61, 32
    %v66 = vpop.permute.xlu0 %65
    %v67 = vadd.f32 %v61, %v66
    %68 = vrot.lane.b32.xlu0 %v64, 32
    %v69 = vpop.permute.xlu0 %68
    %v70 = vadd.f32 %v64, %v69
    %71 = vrot.lane.b32.xlu0 %v67, 64
    %v72 = vpop.permute.xlu0 %71
    %v73 = vadd.f32 %v67, %v72
    %74 = vrot.lane.b32.xlu0 %v70, 64
    %v75 = vpop.permute.xlu0 %74
    %v76 = vadd.f32 %v70, %v75
    %v77 = vmul.f32 %v73, 0.001953125
    %v78 = vmul.f32 %v76, 0.001953125
    %v79 = vmul.f32 %v77, %v77
    %v80 = vsub.f32 %v78, %v79
    %v81 = vmax.f32 %v80, 0.0
    %v82 = vadd.f32 %v81, 1e-05
    %v83 = vrsqrt.pop %v82
    %v84 = vld [vmem:[%s1] sm:$0x1]
    %v85 = vmul.f32 %v84, %v83
    %v86 = vld [vmem:[%s2] sm:$0x1]
    %v87 = vmul.f32 %v77, %v85
    %v88 = vsub.f32 %v86, %v87
    %v90 = vlaneseq
    %v91 = vshrl.u32 %v90, 7
    %v92 = vsub.s32 0, %v91
    %v93 = vrot.slane %v85, %v92
    %v95 = vmul.f32 %v29, %v93
    %v96 = vmul.f32 %v30, %v93
    %v98 = vlaneseq
    %v99 = vshrl.u32 %v98, 7
    %v100 = vsub.s32 0, %v99
    %v101 = vrot.slane %v88, %v100
    %v103 = vadd.f32 %v95, %v101
    %v104 = vadd.f32 %v96, %v101
    %105 = vst [vmem:[#allocation5] sm:$0xff] %v103
    %106 = vst [vmem:[#allocation5 + $0x8] sm:$0xff] %v104
    // Predicated region
    $region18: #{tpu_custom_call.1} parent=1 // pred_check
      _
    $region19: #{tpu_custom_call.1} parent=1 // pred_check_branch
      %108 = sbr.rel (0) target = $region21
    $region20: #{tpu_custom_call.1} parent=1 // pred_region
      %s110 = ssub.s32 256, 256
      %111 = vsyncadd [#allocation4], %s110
      %s112 = sshll.u32 [#allocation5], 4
      %s113 = int_to_ptr.vmem [resolvable:$true] %s112
      %118 = dma.vmem_to_hbm [thread:$0]  %s113, 256, %s3, [#allocation4], 128, 128, 8
    $region21: #{tpu_custom_call.1} parent=1 // pred_fallthru
      _
    // Predicated region
    $region22: #{tpu_custom_call.1} parent=1 // pred_check
      _
    $region23: #{tpu_custom_call.1} parent=1 // pred_check_branch
      %120 = sbr.rel (0) target = $region25
    $region24: #{tpu_custom_call.1} parent=1 // pred_region
      %121 = dma.done [#allocation4], 256
    $region25: #{tpu_custom_call.1} parent=1 // pred_fallthru
      _
    %122 = vsyncpa [#allocation3], 1
    %123 = vsyncpa [#allocation4], 1

</llo_original>
